<compile_context>
chip_gen: v6e
topology: v6e:2x2x1
jax: 0.10.0
libtpu: 0.0.40
codegen_flags: <defaults>
</compile_context>

<pallas_src>
import functools

import jax
import jax.numpy as jnp
from jax.experimental import pallas as pl
from jax.experimental.pallas import tpu as pltpu


def _cdiv(a, b):
    return -(-a // b)


def _round_up(x, m):
    return _cdiv(x, m) * m


def _pick_tile(n_rows, lanes, target_bytes=1 << 20, max_rows=4096):
    """Row-tile size (multiple of 8). Targets ~1 MiB per (tw, lanes) f32 buffer;
    for large row counts aims for >= 2 grid steps so the "parallel" grid axis
    actually shards across v7x's two TensorCores."""
    cap = (target_bytes // (lanes * 4)) // 8 * 8
    cap = max(8, min(max_rows, cap))
    if n_rows <= 256:
        return min(_round_up(n_rows, 8), cap)
    two_way = _round_up(_cdiv(n_rows, 2), 8)
    return min(cap, two_way)


def _angle_add_kernel(sin_t_ref, cos_t_ref, cos_b_ref, sin_b_ref, o_ref):
    """o = sin(T + b) on even channels / cos(T + b) on odd channels.

    The even/odd select is pre-folded into the tables in the wrapper:
      even k: sin_T =  sin(theta), cos_T =  cos(theta)
      odd  k: sin_T =  cos(theta), cos_T = -sin(theta)
    so a single FMA-style expression covers both:
      o = sin_T * cos(b) + cos_T * sin(b)
    sin_T/cos_T are grid-invariant (constant index_map -> VMEM-resident);
    cos_b/sin_b are tiny per-step (1, lanes) rows.  No transcendentals in-kernel.
    """
    cos_b = cos_b_ref[0]  # (1, lanes)
    sin_b = sin_b_ref[0]  # (1, lanes)
    o_ref[...] = sin_t_ref[...] * cos_b + cos_t_ref[...] * sin_b


def _pos_enc_impl(w, c, temperature):
    """Build the (W, C) float32 positional encoding with a Pallas kernel."""
    packed = (c <= 128) and (128 % c == 0)
    if packed:
        # Lane-dense packed layout: P consecutive positions per 128-wide row.
        pos_per_row = 128 // c
        lanes = 128
        n_rows = _cdiv(w, pos_per_row)          # pad positions if W % P != 0
    else:
        # Channel dim padded up to a multiple of 128 -> unmasked full-lane stores.
        pos_per_row = None
        lanes = _round_up(c, 128)
        n_rows = w

    tw = _pick_tile(n_rows, lanes)
    grid = _cdiv(n_rows, tw)
    rows_pad = grid * tw

    # ---- grid-invariant per-tile angle tables (tiny: tw x lanes) -------------
    lane = jnp.arange(lanes, dtype=jnp.int32)
    if packed:
        chan = lane % c                                              # (lanes,)
        row = jnp.arange(tw, dtype=jnp.int32)[:, None]               # (tw, 1)
        pos_off = (row * pos_per_row + (lane // c)[None, :]).astype(jnp.float32)
        pos_step = tw * pos_per_row                                  # positions per grid step
    else:
        chan = jnp.minimum(lane, c - 1)                              # clamp pad lanes
        pos_off = jnp.arange(tw, dtype=jnp.float32)[:, None]         # (tw, 1)
        pos_step = tw

    kf = chan.astype(jnp.float32)
    dim_t = jnp.power(jnp.float32(temperature),
                      2.0 * jnp.floor(kf / 2.0) / jnp.float32(c))    # (lanes,)
    is_even = (chan % 2) == 0                                        # (lanes,)

    theta = pos_off / dim_t[None, :]                                 # (tw, lanes)
    sin_th = jnp.sin(theta)
    cos_th = jnp.cos(theta)
    sin_t = jnp.where(is_even[None, :], sin_th, cos_th)              # multiplies cos(b)
    cos_t = jnp.where(is_even[None, :], cos_th, -sin_th)             # multiplies sin(b)

    # ---- per-grid-step base-angle rows (grid x 1 x lanes) ---------------------
    base = (jnp.arange(grid, dtype=jnp.float32) * jnp.float32(pos_step))[:, None]
    b = base / dim_t[None, :]                                        # (grid, lanes)
    cos_b = jnp.cos(b)[:, None, :]                                   # (grid, 1, lanes)
    sin_b = jnp.sin(b)[:, None, :]                                   # (grid, 1, lanes)

    out_pad = pl.pallas_call(
        _angle_add_kernel,
        out_shape=jax.ShapeDtypeStruct((rows_pad, lanes), jnp.float32),
        grid=(grid,),
        in_specs=[
            pl.BlockSpec((tw, lanes), lambda i: (0, 0)),     # sin_T (VMEM-resident)
            pl.BlockSpec((tw, lanes), lambda i: (0, 0)),     # cos_T (VMEM-resident)
            pl.BlockSpec((1, 1, lanes), lambda i: (i, 0, 0)),  # cos_b row for step i
            pl.BlockSpec((1, 1, lanes), lambda i: (i, 0, 0)),  # sin_b row for step i
        ],
        out_specs=pl.BlockSpec((tw, lanes), lambda i: (i, 0)),
        compiler_params=pltpu.CompilerParams(
            dimension_semantics=("parallel",)),
    )(sin_t, cos_t, cos_b, sin_b)

    if packed:
        # Row-major packed layout == position-major / channel-minor flat order.
        return out_pad.reshape(-1)[: w * c].reshape(w, c)
    return out_pad[:w, :c]


@functools.lru_cache(maxsize=None)
def _pos_enc_cached(w, num_pos_feats, temperature):
    # The encoding depends only on (W, C, temperature) -> compute once per config.
    return _pos_enc_impl(int(w), int(num_pos_feats), float(temperature))


def position_encoding_sine_1d_relative(x, num_pos_feats=64, temperature=10000):
    """x: NCHW array (only W is used, like the torch module). Returns (W, num_pos_feats) f32."""
    return _pos_enc_cached(int(x.shape[3]), int(num_pos_feats), float(temperature))


def _reference(x, num_pos_feats=64, temperature=10000):
    """Pure-JAX reference mirroring the torch code exactly."""
    w = x.shape[3]
    x_embed = jnp.linspace(0.0, w - 1, w, dtype=jnp.float32)
    k = jnp.arange(num_pos_feats, dtype=jnp.float32)
    dim_t = temperature ** (2.0 * jnp.floor(k / 2.0) / num_pos_feats)
    pos_x = x_embed[:, None] / dim_t
    pos = jnp.stack((jnp.sin(pos_x[:, 0::2]), jnp.cos(pos_x[:, 1::2])), axis=2)
    return pos.reshape(w, num_pos_feats)


if __name__ == "__main__":
    key = jax.random.PRNGKey(0)
    # Small NCHW input; only its width (W=16) matters for the forward pass.
    x = jax.random.normal(key, (2, 4, 16, 16), dtype=jnp.float32)

    # Primary config (packed lane-dense path): C=64 -> 2 positions per 128-lane row.
    out = position_encoding_sine_1d_relative(x, 64, 10000)
    out = jax.block_until_ready(out)
    ref = _reference(x, 64, 10000)
    assert out.shape == (16, 64), out.shape
    assert out.dtype == jnp.float32
    assert jnp.allclose(out, ref, atol=1e-5, rtol=1e-5), "packed path mismatch vs reference"

    # C=96 does not divide 128 -> channel-padded lane-dense path (Cpad=128, slice in wrapper).
    out2 = jax.block_until_ready(position_encoding_sine_1d_relative(x, 96, 10000))
    ref2 = _reference(x, 96, 10000)
    assert out2.shape == (16, 96), out2.shape
    assert jnp.allclose(out2, ref2, atol=1e-5, rtol=1e-5), "padded path mismatch vs reference"

    # Irregular larger width: exercises multi-step grid, row padding and the
    # per-step angle-addition rows (W=600, C=64 -> n_rows=300, 2 grid steps).
    x3 = jax.random.normal(key, (1, 4, 8, 600), dtype=jnp.float32)
    out3 = jax.block_until_ready(position_encoding_sine_1d_relative(x3, 64, 10000))
    ref3 = _reference(x3, 64, 10000)
    assert out3.shape == (600, 64), out3.shape
    assert jnp.allclose(out3, ref3, atol=2e-4, rtol=2e-4), "multi-step path mismatch vs reference"

    print("KERNEL_OK")
</pallas_src>

<mosaic_0001>
module attributes {stable_mosaic.version = 11 : i64} {
  func.func @_angle_add_kernel(%arg0: i32, %arg1: memref<8x128xf32, #tpu.memory_space<vmem>>, %arg2: memref<8x128xf32, #tpu.memory_space<vmem>>, %arg3: memref<1x1x128xf32, #tpu.memory_space<vmem>>, %arg4: memref<1x1x128xf32, #tpu.memory_space<vmem>>, %arg5: memref<8x128xf32, #tpu.memory_space<vmem>>) attributes {dimension_semantics = [#tpu.dimension_semantics<parallel>], iteration_bounds = array<i64: 1>, scalar_prefetch = 0 : i64, scratch_operands = 0 : i64, tpu.core_type = #tpu.core_type<tc>, window_params = [{pipeline_mode = #tpu.pipeline_mode<synchronous>, transform_indices = @transform_0, window_bounds = array<i64: 8, 128>}, {pipeline_mode = #tpu.pipeline_mode<synchronous>, transform_indices = @transform_1, window_bounds = array<i64: 8, 128>}, {transform_indices = @transform_2, window_bounds = array<i64: 1, 1, 128>}, {transform_indices = @transform_3, window_bounds = array<i64: 1, 1, 128>}, {transform_indices = @transform_4, window_bounds = array<i64: 8, 128>}]} {
    %c0 = arith.constant 0 : index
    %c0_0 = arith.constant 0 : index
    %c0_1 = arith.constant 0 : index
    %0 = vector.load %arg3[%c0, %c0_0, %c0_1] : memref<1x1x128xf32, #tpu.memory_space<vmem>>, vector<1x1x128xf32>
    %1 = vector.shape_cast %0 : vector<1x1x128xf32> to vector<1x128xf32>
    %c0_2 = arith.constant 0 : index
    %c0_3 = arith.constant 0 : index
    %c0_4 = arith.constant 0 : index
    %2 = vector.load %arg4[%c0_2, %c0_3, %c0_4] : memref<1x1x128xf32, #tpu.memory_space<vmem>>, vector<1x1x128xf32>
    %3 = vector.shape_cast %2 : vector<1x1x128xf32> to vector<1x128xf32>
    %c0_5 = arith.constant 0 : index
    %c0_6 = arith.constant 0 : index
    %4 = vector.load %arg1[%c0_5, %c0_6] : memref<8x128xf32, #tpu.memory_space<vmem>>, vector<8x128xf32>
    %5 = vector.broadcast %1 : vector<1x128xf32> to vector<8x128xf32>
    %6 = arith.mulf %4, %5 : vector<8x128xf32>
    %c0_7 = arith.constant 0 : index
    %c0_8 = arith.constant 0 : index
    %7 = vector.load %arg2[%c0_7, %c0_8] : memref<8x128xf32, #tpu.memory_space<vmem>>, vector<8x128xf32>
    %8 = vector.broadcast %3 : vector<1x128xf32> to vector<8x128xf32>
    %9 = arith.mulf %7, %8 : vector<8x128xf32>
    %10 = arith.addf %6, %9 : vector<8x128xf32>
    %c0_9 = arith.constant 0 : index
    %c0_10 = arith.constant 0 : index
    %11 = vector.load %arg5[%c0_9, %c0_10] : memref<8x128xf32, #tpu.memory_space<vmem>>, vector<8x128xf32>
    tpu.vector_store %arg5[%c0_9, %c0_10], %10 {strides = array<i32>} : memref<8x128xf32, #tpu.memory_space<vmem>>, vector<8x128xf32>,
    return
  }
  func.func @transform_0(%arg0: i32) -> (i32, i32) {
    %c0_i32 = arith.constant 0 : i32
    %c0_i32_0 = arith.constant 0 : i32
    %c0_i32_1 = arith.constant 0 : i32
    return %c0_i32, %c0_i32_0 : i32, i32
  }
  func.func @transform_1(%arg0: i32) -> (i32, i32) {
    %c0_i32 = arith.constant 0 : i32
    %c0_i32_0 = arith.constant 0 : i32
    %c0_i32_1 = arith.constant 0 : i32
    return %c0_i32, %c0_i32_0 : i32, i32
  }
  func.func @transform_2(%arg0: i32) -> (i32, i32, i32) {
    %c0_i32 = arith.constant 0 : i32
    %c0_i32_0 = arith.constant 0 : i32
    %c0_i32_1 = arith.constant 0 : i32
    return %arg0, %c0_i32, %c0_i32_0 : i32, i32, i32
  }
  func.func @transform_3(%arg0: i32) -> (i32, i32, i32) {
    %c0_i32 = arith.constant 0 : i32
    %c0_i32_0 = arith.constant 0 : i32
    %c0_i32_1 = arith.constant 0 : i32
    return %arg0, %c0_i32, %c0_i32_0 : i32, i32, i32
  }
  func.func @transform_4(%arg0: i32) -> (i32, i32) {
    %c0_i32 = arith.constant 0 : i32
    %c0_i32_0 = arith.constant 0 : i32
    return %arg0, %c0_i32 : i32, i32
  }
}

</mosaic_0001>

<llo_original>
// kernel: tpu_custom_call.1
$region0: #{tpu_custom_call.1}
  #allocation0 [shape = 'u32[]', space=smem, size = 0x4, offset = 0x4, fixed_abs, tag = 'smem constant byte address 0x4 - core index']
  #allocation1 [shape = 'u32[144,128]{1,0:T(1,128)}', space=vmem, size = 0x12000, scoped, tag = 'internal scratch']
  %s0 = inlined_call_operand.hbm [shape: f32[8,128], index: 0, kind: input, shape index: {}]
  %s1 = inlined_call_operand.hbm [shape: f32[8,128], index: 1, kind: input, shape index: {}]
  %s2 = inlined_call_operand.vmem [shape: f32[1,1,128], index: 2, kind: input, shape index: {}]
  %s3 = inlined_call_operand.vmem [shape: f32[1,1,128], index: 3, kind: input, shape index: {}]
  %s4 = inlined_call_operand.hbm [shape: f32[8,128], index: 4, kind: output, shape index: {}]
  %s5 = sld [smem:[#allocation0]]
  $region34: #{tpu_custom_call.1} parent=0
    _
  %s7 = ssub.s32 1, %s5
  %s8 = scalar_select 0, %s7, %s5
  $region1: #{tpu_custom_call.1} parent=0
    #allocation2 [shape = 'u8[4096]{0}', space=vmem, size = 0x1000, scoped, tag = 'input window, operand 0, single buffered']
    #allocation3 [shape = 's32[1]{0}', space=sflag, size = 0x4, scoped, tag = 'scoped memory for tpu_custom_call.1']
    #allocation4 [shape = 's32[1]{0}', space=sflag, size = 0x4, scoped, tag = 'scoped memory for tpu_custom_call.1']
    #allocation5 [shape = 'u8[4096]{0}', space=vmem, size = 0x1000, scoped, tag = 'input window, operand 1, single buffered']
    #allocation6 [shape = 's32[1]{0}', space=sflag, size = 0x4, scoped, tag = 'scoped memory for tpu_custom_call.1']
    #allocation7 [shape = 'u8[4096]{0}', space=vmem, size = 0x1000, scoped, tag = 'output window, operand 0, single buffered']
    %9 = vsyncpa [#allocation3], 0
    %10 = vsyncpa [#allocation6], 0
    %11 = vsyncpa [#allocation4], 0
    // Predicated region
    $region2: #{tpu_custom_call.1} parent=1 // pred_check
      _
    $region3: #{tpu_custom_call.1} parent=1 // pred_check_branch
      %13 = sbr.rel (0) target = $region5
    $region4: #{tpu_custom_call.1} parent=1 // pred_region
      %s15 = ssub.s32 128, 128
      %16 = vsyncadd [#allocation3], %s15
      %s18 = sshll.u32 [#allocation2], 4
      %s19 = int_to_ptr.vmem [resolvable:$true] %s18
      %21 = dma.hbm_to_vmem [thread:$0]  %s0, 128, %s19, [#allocation3]
    $region5: #{tpu_custom_call.1} parent=1 // pred_fallthru
      _
    // Predicated region
    $region6: #{tpu_custom_call.1} parent=1 // pred_check
      _
    $region7: #{tpu_custom_call.1} parent=1 // pred_check_branch
      %23 = sbr.rel (0) target = $region9
    $region8: #{tpu_custom_call.1} parent=1 // pred_region
      %s25 = ssub.s32 128, 128
      %26 = vsyncadd [#allocation6], %s25
      %s28 = sshll.u32 [#allocation5], 4
      %s29 = int_to_ptr.vmem [resolvable:$true] %s28
      %31 = dma.hbm_to_vmem [thread:$0]  %s1, 128, %s29, [#allocation6]
    $region9: #{tpu_custom_call.1} parent=1 // pred_fallthru
      _
    // Predicated region
    $region10: #{tpu_custom_call.1} parent=1 // pred_check
      _
    $region11: #{tpu_custom_call.1} parent=1 // pred_check_branch
      %33 = sbr.rel (0) target = $region13
    $region12: #{tpu_custom_call.1} parent=1 // pred_region
      _
    $region13: #{tpu_custom_call.1} parent=1 // pred_fallthru
      _
    // Predicated region
    $region14: #{tpu_custom_call.1} parent=1 // pred_check
      _
    $region15: #{tpu_custom_call.1} parent=1 // pred_check_branch
      %35 = sbr.rel (0) target = $region17
    $region16: #{tpu_custom_call.1} parent=1 // pred_region
      _
    $region17: #{tpu_custom_call.1} parent=1 // pred_fallthru
      _
    // Predicated region
    $region18: #{tpu_custom_call.1} parent=1 // pred_check
      _
    $region19: #{tpu_custom_call.1} parent=1 // pred_check_branch
      %37 = sbr.rel (0) target = $region21
    $region20: #{tpu_custom_call.1} parent=1 // pred_region
      %38 = dma.done [#allocation3], 128
    $region21: #{tpu_custom_call.1} parent=1 // pred_fallthru
      _
    // Predicated region
    $region22: #{tpu_custom_call.1} parent=1 // pred_check
      _
    $region23: #{tpu_custom_call.1} parent=1 // pred_check_branch
      %40 = sbr.rel (0) target = $region25
    $region24: #{tpu_custom_call.1} parent=1 // pred_region
      %41 = dma.done [#allocation6], 128
    $region25: #{tpu_custom_call.1} parent=1 // pred_fallthru
      _
    %v42 = vld [vmem:[%s2] sm:$0x1]
    %v43 = vld [vmem:[%s3] sm:$0x1]
    %v44 = vld [vmem:[#allocation2] sm:$0xff]
    %v46 = vlaneseq
    %v47 = vshrl.u32 %v46, 7
    %v48 = vsub.s32 0, %v47
    %v49 = vrot.slane %v42, %v48
    %v51 = vmul.f32 %v44, %v49
    %v52 = vld [vmem:[#allocation5] sm:$0xff]
    %v54 = vlaneseq
    %v55 = vshrl.u32 %v54, 7
    %v56 = vsub.s32 0, %v55
    %v57 = vrot.slane %v43, %v56
    %v59 = vmul.f32 %v52, %v57
    %v60 = vadd.f32 %v51, %v59
    %61 = vst [vmem:[#allocation7] sm:$0xff] %v60
    // Predicated region
    $region26: #{tpu_custom_call.1} parent=1 // pred_check
      _
    $region27: #{tpu_custom_call.1} parent=1 // pred_check_branch
      %63 = sbr.rel (0) target = $region29
    $region28: #{tpu_custom_call.1} parent=1 // pred_region
      %s65 = ssub.s32 128, 128
      %66 = vsyncadd [#allocation4], %s65
      %s68 = sshll.u32 [#allocation7], 4
      %s69 = int_to_ptr.vmem [resolvable:$true] %s68
      %71 = dma.vmem_to_hbm [thread:$0]  %s69, 128, %s4, [#allocation4]
    $region29: #{tpu_custom_call.1} parent=1 // pred_fallthru
      _
    // Predicated region
    $region30: #{tpu_custom_call.1} parent=1 // pred_check
      _
    $region31: #{tpu_custom_call.1} parent=1 // pred_check_branch
      %73 = sbr.rel (0) target = $region33
    $region32: #{tpu_custom_call.1} parent=1 // pred_region
      %74 = dma.done [#allocation4], 128
    $region33: #{tpu_custom_call.1} parent=1 // pred_fallthru
      _
    %75 = vsyncpa [#allocation3], 1
    %76 = vsyncpa [#allocation6], 1
    %77 = vsyncpa [#allocation4], 1

</llo_original>
